<compile_context>
chip_gen: v7x
topology: tpu7x:2x2x1
jax: 0.10.0
libtpu: 0.0.40
codegen_flags: <defaults>
</compile_context>

<pallas_src>
import math
import functools

import jax
import jax.numpy as jnp
from jax import lax
from jax.experimental import pallas as pl
from jax.experimental.pallas import tpu as pltpu


def _cos_m_theta(c, m):
    """Chebyshev T_m(c) = cos(m*theta) for static m in [0, 5]."""
    if m == 0:
        return jnp.ones_like(c)
    if m == 1:
        return c
    c2 = c * c
    if m == 2:
        return 2.0 * c2 - 1.0
    if m == 3:
        return (4.0 * c2 - 3.0) * c
    if m == 4:
        return 8.0 * c2 * (c2 - 1.0) + 1.0
    if m == 5:
        return ((16.0 * c2 - 20.0) * c2 + 5.0) * c
    raise ValueError("m must be in [0, 5]")


def _normalize_rows(w):
    """Row L2-normalize (f32 math, rsqrt form) and emit bf16 for MXU streaming."""
    w32 = w.astype(jnp.float32)
    sq = jnp.sum(w32 * w32, axis=1, keepdims=True)
    inv = lax.rsqrt(jnp.maximum(sq, 1e-24))
    return (w32 * inv).astype(jnp.bfloat16), sq * inv


def _round_up(n, mult):
    return ((n + mult - 1) // mult) * mult


def angle_linear_kernel(xn_ref, xnorm_ref, wn_ref, label_ref, out_ref, *,
                        m, inv_lamb_p1, thresholds, tile_c):
    # cos_theta = xn @ wn^T  (both operands pre-normalized bf16; f32 accumulation;
    # contraction over dim 1 of BOTH operands -> no transpose materialized).
    cos_theta = lax.dot_general(
        xn_ref[...], wn_ref[...],
        dimension_numbers=(((1,), (1,)), ((), ())),
        preferred_element_type=jnp.float32)                  # (TB, TC) f32
    cos_theta = jnp.clip(cos_theta, -1.0, 1.0)

    x_norm = xnorm_ref[...]                                  # (TB, 1) f32

    # One-hot mask via global class-index compare (offset by the C-tile index).
    col0 = pl.program_id(1) * tile_c
    class_ids = col0 + lax.broadcasted_iota(jnp.int32, cos_theta.shape, 1)
    is_target = (class_ids == label_ref[...]).astype(jnp.float32)   # (TB, TC)

    # Target-column cosine per row (0 if the target class is not in this C tile;
    # the correction is masked out by is_target in that case).
    c_tgt = jnp.sum(cos_theta * is_target, axis=1, keepdims=True)   # (TB, 1)

    # Angular-margin math on the (TB, 1) target-column vector only.
    cos_m_tgt = _cos_m_theta(c_tgt, m)
    k_f = jnp.zeros_like(c_tgt)
    sign = jnp.ones_like(c_tgt)
    for t in thresholds:                                     # static unroll, m compares
        crossed = (c_tgt <= t).astype(jnp.float32)
        k_f = k_f + crossed
        sign = sign * (1.0 - 2.0 * crossed)                  # (-1)^k, no int ops
    phi_tgt = sign * cos_m_tgt - 2.0 * k_f
    corr = (phi_tgt - c_tgt) * inv_lamb_p1 * x_norm          # (TB, 1)

    out_ref[...] = (cos_theta * x_norm + is_target * corr).astype(out_ref.dtype)


def angle_linear(x, weight, label, *, m=2, iter_count=1, tile_b=None, tile_c=None,
                 out_dtype=jnp.float32):
    """Pallas implementation of AngleLinear.forward (one forward call at step `iter_count`)."""
    base, gamma, power, lambda_min = 1000.0, 0.12, 1, 5.0
    lamb = max(lambda_min, base * (1.0 + gamma * iter_count) ** (-power))
    inv_lamb_p1 = 1.0 / (1.0 + lamb)

    B, D = x.shape
    C, D2 = weight.shape
    assert D == D2

    # Hoisted normalizations (once, in XLA); stream both operands as bf16.
    wn_b16, _ = _normalize_rows(weight)
    x32 = x.astype(jnp.float32)
    sq = jnp.sum(x32 * x32, axis=1, keepdims=True)
    inv = lax.rsqrt(jnp.maximum(sq, 1e-24))
    xn_b16 = (x32 * inv).astype(jnp.bfloat16)
    x_norm = sq * inv                                        # == ||x||_2 (f32), ulp-level diff vs sqrt

    # Tile selection: tile_b up to 256 (fills 256-row MXU, cuts W re-streaming),
    # tile_c up to 1024 (lane-dense output, amortized per-step overhead).
    if tile_b is None:
        tile_b = 256 if B >= 256 else _round_up(B, 8)
    if tile_c is None:
        if C >= 1024:
            tile_c = 1024
        elif C >= 512:
            tile_c = 512
        else:
            tile_c = _round_up(C, 128)

    B_pad = _round_up(B, tile_b)
    C_pad = _round_up(C, tile_c)

    xn_p = xn_b16 if B_pad == B else jnp.pad(xn_b16, ((0, B_pad - B), (0, 0)))
    xnorm_p = x_norm if B_pad == B else jnp.pad(x_norm, ((0, B_pad - B), (0, 0)))
    wn_p = wn_b16 if C_pad == C else jnp.pad(wn_b16, ((0, C_pad - C), (0, 0)))
    lbl = label.reshape(-1, 1).astype(jnp.int32)
    # Pad labels with -1 so the margin path never fires on padding rows.
    lbl_p = lbl if B_pad == B else jnp.pad(lbl, ((0, B_pad - B), (0, 0)), constant_values=-1)

    thresholds = tuple(float(math.cos(j * math.pi / m)) for j in range(1, m + 1))
    kernel = functools.partial(angle_linear_kernel, m=m, inv_lamb_p1=float(inv_lamb_p1),
                               thresholds=thresholds, tile_c=tile_c)

    grid = (B_pad // tile_b, C_pad // tile_c)

    # VMEM budget: double-buffered inputs + outputs, with headroom; stays well under
    # the physical limit on every generation (including v7x's 64 MiB).
    tile_bytes = (tile_b * D * 2        # xn bf16
                  + tile_b * 4          # x_norm f32
                  + tile_c * D * 2      # wn bf16
                  + tile_b * 4          # labels i32
                  + tile_b * tile_c * 4)  # out f32
    vmem_limit = min(max(4 * tile_bytes, 32 * 1024 * 1024), 48 * 1024 * 1024)

    out_p = pl.pallas_call(
        kernel,
        out_shape=jax.ShapeDtypeStruct((B_pad, C_pad), out_dtype),
        grid_spec=pltpu.PrefetchScalarGridSpec(
            num_scalar_prefetch=0,
            grid=grid,
            in_specs=[
                pl.BlockSpec((tile_b, D), lambda i, j: (i, 0)),   # xn (bf16), resident over j
                pl.BlockSpec((tile_b, 1), lambda i, j: (i, 0)),   # ||x|| (f32), resident over j
                pl.BlockSpec((tile_c, D), lambda i, j: (j, 0)),   # normalized W rows (bf16, streamed)
                pl.BlockSpec((tile_b, 1), lambda i, j: (i, 0)),   # labels, resident over j
            ],
            out_specs=pl.BlockSpec((tile_b, tile_c), lambda i, j: (i, j)),
        ),
        compiler_params=pltpu.CompilerParams(
            dimension_semantics=("parallel", "parallel"),
            vmem_limit_bytes=int(vmem_limit)),
    )(xn_p, xnorm_p, wn_p, lbl_p)

    return out_p[:B, :C]


def angle_linear_ref(x, weight, label, *, m, iter_count):
    """Pure-JAX reference mirroring the PyTorch forward (acos/floor form).
    The matmul is fed the same bf16-rounded normalized operands as the kernel so the
    comparison isolates the kernel's epilogue math."""
    base, gamma, power, lambda_min = 1000.0, 0.12, 1, 5.0
    lamb = max(lambda_min, base * (1.0 + gamma * iter_count) ** (-power))

    x32 = x.astype(jnp.float32)
    sq = jnp.sum(x32 * x32, axis=1, keepdims=True)
    inv = lax.rsqrt(jnp.maximum(sq, 1e-24))
    xn = (x32 * inv).astype(jnp.bfloat16)
    x_norm = jnp.sqrt(sq)
    wn, _ = _normalize_rows(weight)

    cos_t = jnp.clip(
        lax.dot_general(xn, wn, dimension_numbers=(((1,), (1,)), ((), ())),
                        preferred_element_type=jnp.float32), -1.0, 1.0)
    cos_mt = _cos_m_theta(cos_t, m)
    theta = jnp.arccos(cos_t)
    k = jnp.floor(m * theta / math.pi)
    sign = jnp.where(jnp.mod(k, 2.0) == 0.0, 1.0, -1.0)
    phi = sign * cos_mt - 2.0 * k
    one_hot = jax.nn.one_hot(label, weight.shape[0], dtype=jnp.float32)
    out = (one_hot * (phi - cos_t) / (1.0 + lamb) + cos_t) * x_norm
    thresholds = tuple(float(math.cos(j * math.pi / m)) for j in range(1, m + 1))
    return out, cos_t, thresholds


def xavier_uniform(key, out_features, in_features):
    bound = math.sqrt(6.0 / (in_features + out_features))
    return jax.random.uniform(key, (out_features, in_features), dtype=jnp.float32,
                              minval=-bound, maxval=bound)


if __name__ == "__main__":
    key = jax.random.PRNGKey(0)
    k_x, k_w, k_l = jax.random.split(key, 3)

    batch, in_features, out_features = 16, 32, 256
    iter_count = 1

    x = jax.random.normal(k_x, (batch, in_features), dtype=jnp.float32)
    weight = xavier_uniform(k_w, out_features, in_features)
    label = jax.random.randint(k_l, (batch,), 0, out_features, dtype=jnp.int32)

    for m in (2, 4):
        ref, cos_ref, thresholds = angle_linear_ref(x, weight, label, m=m,
                                                    iter_count=iter_count)

        # Ignore (measure-zero) points sitting essentially on an angular-sector boundary,
        # where floor(m*acos(c)/pi) itself is ill-conditioned.
        near_edge = jnp.zeros(ref.shape, bool)
        for t in thresholds:
            near_edge = near_edge | (jnp.abs(cos_ref - t) < 1e-3)

        for tiles in ((8, 128), (None, None)):
            # (8, 128): exercises a real (2, 2) grid + global class-index offsets.
            # (None, None): default (larger) tiles.
            out = angle_linear(x, weight, label, m=m, iter_count=iter_count,
                               tile_b=tiles[0], tile_c=tiles[1])
            out = jax.block_until_ready(out)

            err = jnp.abs(out - ref)
            tol = 5e-3 + 5e-3 * jnp.abs(ref)
            assert bool(jnp.all((err <= tol) | near_edge)), \
                f"mismatch vs reference (m={m}, tiles={tiles})"

    print("KERNEL_OK")
</pallas_src>

<mosaic_0001>
module attributes {stable_mosaic.version = 11 : i64} {
  func.func @angle_linear_kernel(%arg0: i32, %arg1: i32, %arg2: memref<8x32xbf16, #tpu.memory_space<vmem>>, %arg3: memref<8x1xf32, #tpu.memory_space<vmem>>, %arg4: memref<128x32xbf16, #tpu.memory_space<vmem>>, %arg5: memref<8x1xi32, #tpu.memory_space<vmem>>, %arg6: memref<8x128xf32, #tpu.memory_space<vmem>>) attributes {dimension_semantics = [#tpu.dimension_semantics<parallel>, #tpu.dimension_semantics<parallel>], iteration_bounds = array<i64: 2, 2>, scalar_prefetch = 0 : i64, scratch_operands = 0 : i64, tpu.core_type = #tpu.core_type<tc>, window_params = [{transform_indices = @transform_0, window_bounds = array<i64: 8, 32>}, {transform_indices = @transform_1, window_bounds = array<i64: 8, 1>}, {transform_indices = @transform_2, window_bounds = array<i64: 128, 32>}, {transform_indices = @transform_3, window_bounds = array<i64: 8, 1>}, {transform_indices = @transform_4, window_bounds = array<i64: 8, 128>}]} {
    %c0 = arith.constant 0 : index
    %c0_0 = arith.constant 0 : index
    %0 = vector.load %arg2[%c0, %c0_0] : memref<8x32xbf16, #tpu.memory_space<vmem>>, vector<8x32xbf16>
    %c0_1 = arith.constant 0 : index
    %c0_2 = arith.constant 0 : index
    %1 = vector.load %arg4[%c0_1, %c0_2] : memref<128x32xbf16, #tpu.memory_space<vmem>>, vector<128x32xbf16>
    %cst = arith.constant dense<0.000000e+00> : vector<8x128xf32>
    %2 = tpu.matmul %0, %1, %cst {dimension_numbers = #tpu.dot_dimension_numbers<[1], [1], [0], [0], [0, 0, 1, 0], [], []>} : vector<8x32xbf16>, vector<128x32xbf16>, vector<8x128xf32> -> vector<8x128xf32>
    %cst_3 = arith.constant -1.000000e+00 : f32
    %cst_4 = arith.constant 1.000000e+00 : f32
    %3 = vector.broadcast %cst_3 : f32 to vector<8x128xf32>
    %4 = arith.maximumf %3, %2 : vector<8x128xf32>
    %5 = vector.broadcast %cst_4 : f32 to vector<8x128xf32>
    %6 = arith.minimumf %5, %4 : vector<8x128xf32>
    %c0_5 = arith.constant 0 : index
    %c0_6 = arith.constant 0 : index
    %7 = vector.load %arg3[%c0_5, %c0_6] : memref<8x1xf32, #tpu.memory_space<vmem>>, vector<8x1xf32>
    %c128_i32 = arith.constant 128 : i32
    %8 = arith.muli %arg1, %c128_i32 : i32
    %9 = tpu.iota {dimensions = array<i32: 1>} : vector<8x128xi32>
    %10 = vector.broadcast %8 : i32 to vector<8x128xi32>
    %11 = arith.addi %10, %9 : vector<8x128xi32>
    %c0_7 = arith.constant 0 : index
    %c0_8 = arith.constant 0 : index
    %12 = vector.load %arg5[%c0_7, %c0_8] : memref<8x1xi32, #tpu.memory_space<vmem>>, vector<8x1xi32>
    %13 = vector.broadcast %12 : vector<8x1xi32> to vector<8x128xi32>
    %14 = arith.cmpi eq, %11, %13 : vector<8x128xi32>
    %15 = arith.extui %14 : vector<8x128xi1> to vector<8x128xi32>
    %16 = arith.sitofp %15 : vector<8x128xi32> to vector<8x128xf32>
    %17 = arith.mulf %6, %16 : vector<8x128xf32>
    %cst_9 = arith.constant dense<0.000000e+00> : vector<8xf32>
    %18 = vector.multi_reduction <add>, %17, %cst_9 [1] : vector<8x128xf32> to vector<8xf32>
    %19 = vector.shape_cast %18 : vector<8xf32> to vector<8x1xf32>
    %20 = arith.mulf %19, %19 : vector<8x1xf32>
    %cst_10 = arith.constant 2.000000e+00 : f32
    %21 = vector.broadcast %cst_10 : f32 to vector<8x1xf32>
    %22 = arith.mulf %21, %20 : vector<8x1xf32>
    %cst_11 = arith.constant 1.000000e+00 : f32
    %23 = vector.broadcast %cst_11 : f32 to vector<8x1xf32>
    %24 = arith.subf %22, %23 : vector<8x1xf32>
    %cst_12 = arith.constant 0.000000e+00 : f32
    %25 = vector.broadcast %cst_12 : f32 to vector<8x1xf32>
    %cst_13 = arith.constant 1.000000e+00 : f32
    %26 = vector.broadcast %cst_13 : f32 to vector<8x1xf32>
    %cst_14 = arith.constant 6.12323426E-17 : f32
    %27 = vector.broadcast %cst_14 : f32 to vector<8x1xf32>
    %28 = arith.cmpf ole, %19, %27 : vector<8x1xf32>
    %29 = arith.extui %28 : vector<8x1xi1> to vector<8x1xi32>
    %30 = arith.sitofp %29 : vector<8x1xi32> to vector<8x1xf32>
    %31 = arith.addf %25, %30 : vector<8x1xf32>
    %cst_15 = arith.constant 2.000000e+00 : f32
    %32 = vector.broadcast %cst_15 : f32 to vector<8x1xf32>
    %33 = arith.mulf %32, %30 : vector<8x1xf32>
    %cst_16 = arith.constant 1.000000e+00 : f32
    %34 = vector.broadcast %cst_16 : f32 to vector<8x1xf32>
    %35 = arith.subf %34, %33 : vector<8x1xf32>
    %36 = arith.mulf %26, %35 : vector<8x1xf32>
    %cst_17 = arith.constant -1.000000e+00 : f32
    %37 = vector.broadcast %cst_17 : f32 to vector<8x1xf32>
    %38 = arith.cmpf ole, %19, %37 : vector<8x1xf32>
    %39 = arith.extui %38 : vector<8x1xi1> to vector<8x1xi32>
    %40 = arith.sitofp %39 : vector<8x1xi32> to vector<8x1xf32>
    %41 = arith.addf %31, %40 : vector<8x1xf32>
    %cst_18 = arith.constant 2.000000e+00 : f32
    %42 = vector.broadcast %cst_18 : f32 to vector<8x1xf32>
    %43 = arith.mulf %42, %40 : vector<8x1xf32>
    %cst_19 = arith.constant 1.000000e+00 : f32
    %44 = vector.broadcast %cst_19 : f32 to vector<8x1xf32>
    %45 = arith.subf %44, %43 : vector<8x1xf32>
    %46 = arith.mulf %36, %45 : vector<8x1xf32>
    %47 = arith.mulf %46, %24 : vector<8x1xf32>
    %cst_20 = arith.constant 2.000000e+00 : f32
    %48 = vector.broadcast %cst_20 : f32 to vector<8x1xf32>
    %49 = arith.mulf %48, %41 : vector<8x1xf32>
    %50 = arith.subf %47, %49 : vector<8x1xf32>
    %51 = arith.subf %50, %19 : vector<8x1xf32>
    %cst_21 = arith.constant 0.00111874705 : f32
    %52 = vector.broadcast %cst_21 : f32 to vector<8x1xf32>
    %53 = arith.mulf %51, %52 : vector<8x1xf32>
    %54 = arith.mulf %53, %7 : vector<8x1xf32>
    %55 = vector.broadcast %7 : vector<8x1xf32> to vector<8x128xf32>
    %56 = arith.mulf %6, %55 : vector<8x128xf32>
    %57 = vector.broadcast %54 : vector<8x1xf32> to vector<8x128xf32>
    %58 = arith.mulf %16, %57 : vector<8x128xf32>
    %59 = arith.addf %56, %58 : vector<8x128xf32>
    %c0_22 = arith.constant 0 : index
    %c0_23 = arith.constant 0 : index
    %60 = vector.load %arg6[%c0_22, %c0_23] : memref<8x128xf32, #tpu.memory_space<vmem>>, vector<8x128xf32>
    tpu.vector_store %arg6[%c0_22, %c0_23], %59 {strides = array<i32>} : memref<8x128xf32, #tpu.memory_space<vmem>>, vector<8x128xf32>,
    return
  }
  func.func @transform_0(%arg0: i32, %arg1: i32) -> (i32, i32) {
    %c0_i32 = arith.constant 0 : i32
    %c0_i32_0 = arith.constant 0 : i32
    return %arg0, %c0_i32 : i32, i32
  }
  func.func @transform_1(%arg0: i32, %arg1: i32) -> (i32, i32) {
    %c0_i32 = arith.constant 0 : i32
    %c0_i32_0 = arith.constant 0 : i32
    return %arg0, %c0_i32 : i32, i32
  }
  func.func @transform_2(%arg0: i32, %arg1: i32) -> (i32, i32) {
    %c0_i32 = arith.constant 0 : i32
    %c0_i32_0 = arith.constant 0 : i32
    return %arg1, %c0_i32 : i32, i32
  }
  func.func @transform_3(%arg0: i32, %arg1: i32) -> (i32, i32) {
    %c0_i32 = arith.constant 0 : i32
    %c0_i32_0 = arith.constant 0 : i32
    return %arg0, %c0_i32 : i32, i32
  }
  func.func @transform_4(%arg0: i32, %arg1: i32) -> (i32, i32) {
    %c0_i32 = arith.constant 0 : i32
    return %arg0, %arg1 : i32, i32
  }
}

</mosaic_0001>

<llo_original>
// kernel: tpu_custom_call.1
$region0: #{tpu_custom_call.1}
  #allocation0 [shape = 'u32[]', space=smem, size = 0x4, offset = 0x4, fixed_abs, tag = 'smem constant byte address 0x4 - core index']
  #allocation1 [shape = 'u32[144,128]{1,0:T(1,128)}', space=vmem, size = 0x12000, scoped, tag = 'internal scratch']
  %s0 = inlined_call_operand.vmem [shape: bf16[16,32], index: 0, kind: input, shape index: {}]
  %s1 = inlined_call_operand.vmem [shape: f32[16,1], index: 1, kind: input, shape index: {}]
  %s2 = inlined_call_operand.vmem [shape: bf16[256,32], index: 2, kind: input, shape index: {}]
  %s3 = inlined_call_operand.vmem [shape: s32[16,1], index: 3, kind: input, shape index: {}]
  %s4 = inlined_call_operand.hbm [shape: f32[16,256], index: 4, kind: output, shape index: {}]
  %s5 = sld [smem:[#allocation0]]
  $region49: #{tpu_custom_call.1} parent=0
    _
  %s7 = ssub.s32 1, %s5
  %s8 = scalar_select 0, %s7, %s5
  $region1: #{tpu_custom_call.1} parent=0
    #allocation2 [shape = 'u8[8192]{0}', space=vmem, size = 0x2000, scoped, tag = 'output window, operand 0']
    #allocation3 [shape = 's32[2]{0}', space=sflag, size = 0x8, scoped, tag = 'scoped memory for tpu_custom_call.1']
    %9 = vsyncpa [#allocation3], 0
    %s10 = scalar_lea.sflag [#allocation3], 1
    %11 = vsyncpa %s10, 0
    loop: start=0, step=1, limit=6
    $region2: #{tpu_custom_call.1} parent=1 // loop_pre_header
      _
    $region3: #{tpu_custom_call.1} parent=1 // loop_header
      %s13 = sphi 0, %s17
      %p14 = scmp.ge.s32.totalorder %s13, 6
      %s20 = sphi 0, %s32
      %s21 = sphi 0, %s28
      %s22 = sphi 0, %s20
      %s23 = sphi 0, %s21
      %s24 = sphi 0, %s22
      %s25 = sphi 0, %s23
      %s35 = sphi 0, %s37
      %s38 = sphi 0, %s35
      %s39 = sphi 0, %s38
      %s55 = sphi 0, %s39
      %s61 = sphi 0, %s63
      %s64 = sphi 0, %s61
      %s65 = sphi 0, %s64
      %s81 = sphi 0, %s65
      %s87 = sphi 0, %s89
      %s90 = sphi 0, %s87
      %s91 = sphi 0, %s90
      %s107 = sphi 0, %s91
      %s113 = sphi 0, %s115
      %s116 = sphi 0, %s113
      %s117 = sphi 0, %s116
      %s133 = sphi 0, %s117
      %s141 = sphi 0, %s143
      %s144 = sphi 0, %s141
      %s145 = sphi 0, %s144
      %s161 = sphi 0, %s145
    $region4: #{tpu_custom_call.1} parent=1 // loop_header_branch
      %16 = sbr.rel (%p14) target = $region8
    $region5: #{tpu_custom_call.1} parent=1 // loop_body
      %s18 = ssub.s32 %s13, 1
      %s19 = ssub.s32 %s13, 2
      %s26 = sadd.s32 1, %s21
      %p27 = scmp.ge.s32.totalorder %s26, 2
      %s28 = scalar_select %p27, 0, %s26
      %s29 = sadd.s32 1, %s20
      %s30 = scalar_select %p27, %s29, %s20
      %p31 = scmp.ge.s32.totalorder %s30, 2
      %s32 = scalar_select %p31, 0, %s30
      %s33 = ssub.s32 %s20, %s32
      %p34 = scmp.eq.s32.totalorder %s33, 0
      %s36 = sadd.s32 %s35, 1
      %s37 = scalar_select %p34, %s35, %s36
      %p40 = pneg %p34
      %p41 = scmp.eq.s32.totalorder %s13, 3
      %p42 = por %p40, %p41
      %p43 = scmp.ne.s32.totalorder %s35, %s38
      %p44 = scmp.eq.s32.totalorder %s13, 0
      %p45 = por %p43, %p44
      %p46 = scmp.ne.s32.totalorder %s35, %s38
      %p47 = scmp.eq.s32.totalorder %s18, 3
      %p48 = por %p46, %p47
      %p49 = scmp.ne.s32.totalorder %s38, %s39
      %p50 = scmp.eq.s32.totalorder %s18, 0
      %p51 = por %p49, %p50
      %p52 = scmp.ne.s32.totalorder %s38, %s39
      %p53 = scmp.eq.s32.totalorder %s19, 3
      %p54 = por %p52, %p53
      %p56 = scmp.ne.s32.totalorder %s39, %s55
      %p57 = scmp.eq.s32.totalorder %s19, 0
      %p58 = por %p56, %p57
      %s59 = ssub.s32 %s20, %s32
      %p60 = scmp.eq.s32.totalorder %s59, 0
      %s62 = sadd.s32 %s61, 1
      %s63 = scalar_select %p60, %s61, %s62
      %p66 = pneg %p60
      %p67 = scmp.eq.s32.totalorder %s13, 3
      %p68 = por %p66, %p67
      %p69 = scmp.ne.s32.totalorder %s61, %s64
      %p70 = scmp.eq.s32.totalorder %s13, 0
      %p71 = por %p69, %p70
      %p72 = scmp.ne.s32.totalorder %s61, %s64
      %p73 = scmp.eq.s32.totalorder %s18, 3
      %p74 = por %p72, %p73
      %p75 = scmp.ne.s32.totalorder %s64, %s65
      %p76 = scmp.eq.s32.totalorder %s18, 0
      %p77 = por %p75, %p76
      %p78 = scmp.ne.s32.totalorder %s64, %s65
      %p79 = scmp.eq.s32.totalorder %s19, 3
      %p80 = por %p78, %p79
      %p82 = scmp.ne.s32.totalorder %s65, %s81
      %p83 = scmp.eq.s32.totalorder %s19, 0
      %p84 = por %p82, %p83
      %s85 = ssub.s32 %s21, %s28
      %p86 = scmp.eq.s32.totalorder %s85, 0
      %s88 = sadd.s32 %s87, 1
      %s89 = scalar_select %p86, %s87, %s88
      %p92 = pneg %p86
      %p93 = scmp.eq.s32.totalorder %s13, 3
      %p94 = por %p92, %p93
      %p95 = scmp.ne.s32.totalorder %s87, %s90
      %p96 = scmp.eq.s32.totalorder %s13, 0
      %p97 = por %p95, %p96
      %p98 = scmp.ne.s32.totalorder %s87, %s90
      %p99 = scmp.eq.s32.totalorder %s18, 3
      %p100 = por %p98, %p99
      %p101 = scmp.ne.s32.totalorder %s90, %s91
      %p102 = scmp.eq.s32.totalorder %s18, 0
      %p103 = por %p101, %p102
      %p104 = scmp.ne.s32.totalorder %s90, %s91
      %p105 = scmp.eq.s32.totalorder %s19, 3
      %p106 = por %p104, %p105
      %p108 = scmp.ne.s32.totalorder %s91, %s107
      %p109 = scmp.eq.s32.totalorder %s19, 0
      %p110 = por %p108, %p109
      %s111 = ssub.s32 %s20, %s32
      %p112 = scmp.eq.s32.totalorder %s111, 0
      %s114 = sadd.s32 %s113, 1
      %s115 = scalar_select %p112, %s113, %s114
      %p118 = pneg %p112
      %p119 = scmp.eq.s32.totalorder %s13, 3
      %p120 = por %p118, %p119
      %p121 = scmp.ne.s32.totalorder %s113, %s116
      %p122 = scmp.eq.s32.totalorder %s13, 0
      %p123 = por %p121, %p122
      %p124 = scmp.ne.s32.totalorder %s113, %s116
      %p125 = scmp.eq.s32.totalorder %s18, 3
      %p126 = por %p124, %p125
      %p127 = scmp.ne.s32.totalorder %s116, %s117
      %p128 = scmp.eq.s32.totalorder %s18, 0
      %p129 = por %p127, %p128
      %p130 = scmp.ne.s32.totalorder %s116, %s117
      %p131 = scmp.eq.s32.totalorder %s19, 3
      %p132 = por %p130, %p131
      %p134 = scmp.ne.s32.totalorder %s117, %s133
      %p135 = scmp.eq.s32.totalorder %s19, 0
      %p136 = por %p134, %p135
      %s137 = ssub.s32 %s20, %s32
      %s138 = ssub.s32 %s21, %s28
      %s139 = sor.u32 %s137, %s138
      %p140 = scmp.eq.s32.totalorder %s139, 0
      %s142 = sadd.s32 %s141, 1
      %s143 = scalar_select %p140, %s141, %s142
      %p146 = pneg %p140
      %p147 = scmp.eq.s32.totalorder %s13, 3
      %p148 = por %p146, %p147
      %p149 = scmp.ne.s32.totalorder %s141, %s144
      %p150 = scmp.eq.s32.totalorder %s13, 0
      %p151 = por %p149, %p150
      %p152 = scmp.ne.s32.totalorder %s141, %s144
      %p153 = scmp.eq.s32.totalorder %s18, 3
      %p154 = por %p152, %p153
      %p155 = scmp.ne.s32.totalorder %s144, %s145
      %p156 = scmp.eq.s32.totalorder %s18, 0
      %p157 = por %p155, %p156
      %p158 = scmp.ne.s32.totalorder %s144, %s145
      %p159 = scmp.eq.s32.totalorder %s19, 3
      %p160 = por %p158, %p159
      %p162 = scmp.ne.s32.totalorder %s145, %s161
      %p163 = scmp.eq.s32.totalorder %s19, 0
      %p164 = por %p162, %p163
      %p165 = scmp.le.s32.totalorder 1, %s13
      %p166 = scmp.lt.s32.totalorder %s13, 5
      %p167 = pnand %p165, %p166
      %p168 = pneg %p167
      // Predicated region
      $region9: #{tpu_custom_call.1} parent=5 // pred_check
        _
      $region10: #{tpu_custom_call.1} parent=5 // pred_check_branch
        %170 = sbr.rel (%p167) target = $region12
      $region11: #{tpu_custom_call.1} parent=5 // pred_region
        %s171 = ssub.s32 %s13, 1
      $region12: #{tpu_custom_call.1} parent=5 // pred_fallthru
        _
      %p172 = scmp.lt.s32.totalorder %s13, 4
      // Predicated region
      $region13: #{tpu_custom_call.1} parent=5 // pred_check
        %p173 = pneg %p172
      $region14: #{tpu_custom_call.1} parent=5 // pred_check_branch
        %175 = sbr.rel (%p173) target = $region16
      $region15: #{tpu_custom_call.1} parent=5 // pred_region
        // Predicated region
        $region17: #{tpu_custom_call.1} parent=15 // pred_check
          %p176 = pneg %p45
        $region18: #{tpu_custom_call.1} parent=15 // pred_check_branch
          %178 = sbr.rel (%p176) target = $region20
        $region19: #{tpu_custom_call.1} parent=15 // pred_region
          %p179 = scmp.lt.s32.totalorder %s20, 1
          %s180 = scalar_select %p179, %s20, 1
          %s181 = smul.addr %s180, 4
          %s182 = scalar_lea.vmem %s0, %s181
        $region20: #{tpu_custom_call.1} parent=15 // pred_fallthru
          _
        // Predicated region
        $region21: #{tpu_custom_call.1} parent=15 // pred_check
          %p183 = pneg %p71
        $region22: #{tpu_custom_call.1} parent=15 // pred_check_branch
          %185 = sbr.rel (%p183) target = $region24
        $region23: #{tpu_custom_call.1} parent=15 // pred_region
          %p186 = scmp.lt.s32.totalorder %s20, 1
          %s187 = scalar_select %p186, %s20, 1
          %s188 = smul.addr %s187, 8
          %s189 = scalar_lea.vmem %s1, %s188
        $region24: #{tpu_custom_call.1} parent=15 // pred_fallthru
          _
        // Predicated region
        $region25: #{tpu_custom_call.1} parent=15 // pred_check
          %p190 = pneg %p97
        $region26: #{tpu_custom_call.1} parent=15 // pred_check_branch
          %192 = sbr.rel (%p190) target = $region28
        $region27: #{tpu_custom_call.1} parent=15 // pred_region
          %s193 = smul.u32 16, %s21
          %p194 = scmp.lt.s32.totalorder %s193, 31
          %s195 = scalar_select %p194, %s193, 31
          %s196 = smul.addr %s195, 4
          %s197 = scalar_lea.vmem %s2, %s196
          %s198 = smul.u32 16, %s21
        $region28: #{tpu_custom_call.1} parent=15 // pred_fallthru
          _
        // Predicated region
        $region29: #{tpu_custom_call.1} parent=15 // pred_check
          %p199 = pneg %p123
        $region30: #{tpu_custom_call.1} parent=15 // pred_check_branch
          %201 = sbr.rel (%p199) target = $region32
        $region31: #{tpu_custom_call.1} parent=15 // pred_region
          %p202 = scmp.lt.s32.totalorder %s20, 1
          %s203 = scalar_select %p202, %s20, 1
          %s204 = smul.addr %s203, 8
          %s205 = scalar_lea.vmem %s3, %s204
        $region32: #{tpu_custom_call.1} parent=15 // pred_fallthru
          _
      $region16: #{tpu_custom_call.1} parent=5 // pred_fallthru
        _
      %p206 = scmp.le.s32.totalorder 1, %s13
      %p207 = scmp.lt.s32.totalorder %s13, 5
      %p208 = pnand %p206, %p207
      %p209 = pneg %p208
      // Predicated region
      $region33: #{tpu_custom_call.1} parent=5 // pred_check
        _
      $region34: #{tpu_custom_call.1} parent=5 // pred_check_branch
        %211 = sbr.rel (%p208) target = $region36
      $region35: #{tpu_custom_call.1} parent=5 // pred_region
        %s212 = ssub.s32 %s13, 1
        %p213 = scmp.lt.s32.totalorder %s22, 1
        %s214 = scalar_select %p213, %s22, 1
        %s215 = smul.addr %s214, 4
        %s216 = scalar_lea.vmem %s0, %s215
        %p217 = pneg %p51
        %p218 = pneg %p48
        %p219 = scmp.lt.s32.totalorder %s22, 1
        %s220 = scalar_select %p219, %s22, 1
        %s221 = smul.addr %s220, 8
        %s222 = scalar_lea.vmem %s1, %s221
        %p223 = pneg %p77
        %p224 = pneg %p74
        %s225 = smul.u32 16, %s23
        %p226 = scmp.lt.s32.totalorder %s225, 31
        %s227 = scalar_select %p226, %s225, 31
        %s228 = smul.addr %s227, 4
        %s229 = scalar_lea.vmem %s2, %s228
        %p230 = pneg %p103
        %p231 = pneg %p100
        %p232 = scmp.lt.s32.totalorder %s22, 1
        %s233 = scalar_select %p232, %s22, 1
        %s234 = smul.addr %s233, 8
        %s235 = scalar_lea.vmem %s3, %s234
        %p236 = pneg %p129
        %p237 = pneg %p126
        %p238 = pneg %p157
        %p239 = pneg %p154
        %s240 = sand.u32 %s144, 1
        %s241 = scalar_lea.sflag [#allocation3], %s240
        %s242 = sand.u32 %s144, 1
        %s243 = smul.addr %s242, 8
        %s244 = scalar_lea.vmem [#allocation2], %s243
        %p245 = scmp.lt.s32.totalorder %s22, 1
        %s246 = scalar_select %p245, %s22, 1
        %s247 = smul.addr %s246, 4
        %s248 = scalar_lea.vmem %s0, %s247
        %p249 = scmp.lt.s32.totalorder %s22, 1
        %s250 = scalar_select %p249, %s22, 1
        %s251 = smul.addr %s250, 8
        %s252 = scalar_lea.vmem %s1, %s251
        %s253 = smul.u32 16, %s23
        %p254 = scmp.lt.s32.totalorder %s253, 31
        %s255 = scalar_select %p254, %s253, 31
        %s256 = smul.addr %s255, 4
        %s257 = scalar_lea.vmem %s2, %s256
        %s258 = smul.u32 16, %s23
        %p259 = scmp.lt.s32.totalorder %s22, 1
        %s260 = scalar_select %p259, %s22, 1
        %s261 = smul.addr %s260, 8
        %s262 = scalar_lea.vmem %s3, %s261
        %v264 = vld [vmem:[%s248] sm:$0xf]
        %v265 = vld [vmem:[%s257] sm:$0xf]
        %v266 = vld [vmem:[%s257 + $0x4] sm:$0xf]
        %v267 = vld [vmem:[%s257 + $0x8] sm:$0xf]
        %v268 = vld [vmem:[%s257 + $0xc] sm:$0xf]
        %v269 = vld [vmem:[%s257 + $0x10] sm:$0xf]
        %v270 = vld [vmem:[%s257 + $0x14] sm:$0xf]
        %v271 = vld [vmem:[%s257 + $0x18] sm:$0xf]
        %v272 = vld [vmem:[%s257 + $0x1c] sm:$0xf]
        %v273 = vld [vmem:[%s257 + $0x20] sm:$0xf]
        %v274 = vld [vmem:[%s257 + $0x24] sm:$0xf]
        %v275 = vld [vmem:[%s257 + $0x28] sm:$0xf]
        %v276 = vld [vmem:[%s257 + $0x2c] sm:$0xf]
        %v277 = vld [vmem:[%s257 + $0x30] sm:$0xf]
        %v278 = vld [vmem:[%s257 + $0x34] sm:$0xf]
        %v279 = vld [vmem:[%s257 + $0x38] sm:$0xf]
        %v280 = vld [vmem:[%s257 + $0x3c] sm:$0xf]
        %v297 = vunpack.c.l.b16 %v265
        %v298 = vunpack.c.l.b16 %v266
        %v299 = vunpack.c.l.b16 %v267
        %v300 = vunpack.c.l.b16 %v268
        %v301 = vunpack.c.l.b16 %v269
        %v302 = vunpack.c.l.b16 %v270
        %v303 = vunpack.c.l.b16 %v271
        %v304 = vunpack.c.l.b16 %v272
        %v305 = vunpack.c.l.b16 %v273
        %v306 = vunpack.c.l.b16 %v274
        %v307 = vunpack.c.l.b16 %v275
        %v308 = vunpack.c.l.b16 %v276
        %v309 = vunpack.c.l.b16 %v277
        %v310 = vunpack.c.l.b16 %v278
        %v311 = vunpack.c.l.b16 %v279
        %v312 = vunpack.c.l.b16 %v280
        %v313 = vpack.c.b16 %v298, %v297
        %v314 = vpack.c.b16 %v300, %v299
        %v315 = vpack.c.b16 %v302, %v301
        %v316 = vpack.c.b16 %v304, %v303
        %v317 = vpack.c.b16 %v306, %v305
        %v318 = vpack.c.b16 %v308, %v307
        %v319 = vpack.c.b16 %v310, %v309
        %v320 = vpack.c.b16 %v312, %v311
        %vm321 = vcmask 261120
        %v323 = vsel %vm321, %v264, 0
        %v326 = vsel %vm321, %v313, 0
        %v329 = vsel %vm321, %v314, 0
        %v332 = vsel %vm321, %v315, 0
        %v335 = vsel %vm321, %v316, 0
        %v338 = vsel %vm321, %v317, 0
        %v341 = vsel %vm321, %v318, 0
        %v344 = vsel %vm321, %v319, 0
        %v347 = vsel %vm321, %v320, 0
        %349 = vmatprep.subr.bf16.mxu0 0
        %350 = vmatpush1.bf16.xpose.msra.mxu0 %v326
        %351 = vmatprep.subr.bf16.mxu0 0
        %352 = vmatpush1.bf16.xpose.msra.mxu0 %v329
        %353 = vmatprep.subr.bf16.mxu0 0
        %354 = vmatpush1.bf16.xpose.msra.mxu0 %v332
        %355 = vmatprep.subr.bf16.mxu0 0
        %356 = vmatpush1.bf16.xpose.msra.mxu0 %v335
        %357 = vmatprep.subr.bf16.mxu0 0
        %358 = vmatpush1.bf16.xpose.msra.mxu0 %v338
        %359 = vmatprep.subr.bf16.mxu0 0
        %360 = vmatpush1.bf16.xpose.msra.mxu0 %v341
        %361 = vmatprep.subr.bf16.mxu0 0
        %362 = vmatpush1.bf16.xpose.msra.mxu0 %v344
        %363 = vmatprep.subr.bf16.mxu0 0
        %364 = vmatpush1.bf16.xpose.msra.mxu0 %v347
        %365 = vmatprep.subr.bf16.mxu0 0
        %366 = vmatpush1.bf16.xpose.msra.mxu0 0
        %367 = vmatprep.subr.bf16.mxu0 0
        %368 = vmatpush1.bf16.xpose.msra.mxu0 0
        %369 = vmatprep.subr.bf16.mxu0 0
        %370 = vmatpush1.bf16.xpose.msra.mxu0 0
        %371 = vmatprep.subr.bf16.mxu0 0
        %372 = vmatpush1.bf16.xpose.msra.mxu0 0
        %373 = vmatprep.subr.bf16.mxu0 0
        %374 = vmatpush1.bf16.xpose.msra.mxu0 0
        %375 = vmatprep.subr.bf16.mxu0 0
        %376 = vmatpush1.bf16.xpose.msra.mxu0 0
        %377 = vmatprep.subr.bf16.mxu0 0
        %378 = vmatpush1.bf16.xpose.msra.mxu0 0
        %379 = vmatprep.subr.bf16.mxu0 0
        %380 = vmatpush1.bf16.xpose.msra.mxu0 0
        %381 = vmatprep.mubr.bf16.mxu0 0
        %382 = vmatmul.mubr.bf16.gmra.mrb[0].mxu0 %v323
        %v383 = vpop.f32.mrb[0].mxu0
        %v384 = vadd.f32 0.0, %v383
        %v385 = vpop.f32.mrb[0].mxu0
        %v386 = vpop.f32.mrb[0].mxu0
        %v387 = vpop.f32.mrb[0].mxu0
        %388 = vdwg.mxu0
        %v389 = vmax.f32 %v384, -1.0
        %v390 = vmin.f32 %v389, 1.0
        %v391 = vld [vmem:[%s252] sm:$0xff]
        %s392 = smul.u32 %s23, 128
        %v393 = vlaneseq
        %v394 = vand.u32 %v393, 127
        %v395 = vstv %s392
        %v396 = vadd.s32 %v395, %v394
        %v397 = vld [vmem:[%s262] sm:$0xff]
        %398 = vset.pattern.permute.xlu0 0
        %399 = vperm.xlu0 %398, %v397
        %v400 = vpop.permute.xlu0 %399
        %vm401 = vcmp.eq.s32.totalorder %v396, %v400
        %v402 = vsel %vm401, 1, 0
        %v403 = vcvt.s32.f32 %v402
        %v404 = vmul.f32 %v390, %v403
        %405 = vadd.xlane.f32.xlu0 %v404
        %v406 = vpop.xlane.xlu0 %405
        %v407 = vmul.f32 %v406, %v406
        %v408 = vmul.f32 %v407, 2.0
        %v409 = vsub.f32 %v408, 1.0
        %vm410 = vcmp.le.f32.partialorder %v406, 6.123234e-17
        %v411 = vsel %vm410, 1, 0
        %v412 = vcvt.s32.f32 %v411
        %v413 = vadd.f32 %v412, 0.0
        %v414 = vmul.f32 %v412, 2.0
        %v415 = vsub.f32 1.0, %v414
        %vm416 = vcmp.le.f32.partialorder %v406, -1.0
        %v417 = vsel %vm416, 1, 0
        %v418 = vcvt.s32.f32 %v417
        %v419 = vadd.f32 %v413, %v418
        %v420 = vmul.f32 %v418, 2.0
        %v421 = vsub.f32 1.0, %v420
        %v422 = vmul.f32 %v415, %v421
        %v423 = vmul.f32 %v422, %v409
        %v424 = vmul.f32 %v419, 2.0
        %v425 = vsub.f32 %v423, %v424
        %v426 = vsub.f32 %v425, %v406
        %v427 = vmul.f32 %v426, 0.001118747
        %v428 = vmul.f32 %v427, %v391
        %430 = vset.pattern.permute.xlu0 0
        %431 = vperm.xlu0 %430, %v391
        %v432 = vpop.permute.xlu0 %431
        %v434 = vmul.f32 %v390, %v432
        %436 = vset.pattern.permute.xlu0 0
        %437 = vperm.xlu0 %436, %v428
        %v438 = vpop.permute.xlu0 %437
        %v440 = vmul.f32 %v403, %v438
        %v441 = vadd.f32 %v434, %v440
        %442 = vst [vmem:[%s244] sm:$0xff] %v441
        %s443 = sand.u32 %s144, 1
        %s444 = scalar_lea.sflag [#allocation3], %s443
        %s445 = sand.u32 %s144, 1
        %s446 = smul.addr %s445, 8
        %s447 = scalar_lea.vmem [#allocation2], %s446
        // Predicated region
        $region37: #{tpu_custom_call.1} parent=35 // pred_check
          %p448 = pneg %p154
        $region38: #{tpu_custom_call.1} parent=35 // pred_check_branch
          %450 = sbr.rel (%p448) target = $region40
        $region39: #{tpu_custom_call.1} parent=35 // pred_region
          %s452 = ssub.s32 128, 128
          %453 = vsyncadd %s444, %s452
          %s454 = smul.addr %s22, 2
          %s455 = sadd.s32 %s23, %s454
          %s456 = smul.addr %s455, 128
          %s457 = scalar_lea.hbm %s4, %s456
          %s459 = sshll.u32 %s447, 4
          %s460 = int_to_ptr.vmem [resolvable:$true] %s459
          %462 = dma.vmem_to_hbm [thread:$0]  %s460, 128, %s457, %s444
        $region40: #{tpu_custom_call.1} parent=35 // pred_fallthru
          _
      $region36: #{tpu_custom_call.1} parent=5 // pred_fallthru
        _
      %p463 = scmp.le.s32.totalorder 2, %s13
      // Predicated region
      $region41: #{tpu_custom_call.1} parent=5 // pred_check
        %p464 = pneg %p463
      $region42: #{tpu_custom_call.1} parent=5 // pred_check_branch
        %466 = sbr.rel (%p464) target = $region44
      $region43: #{tpu_custom_call.1} parent=5 // pred_region
        %s467 = ssub.s32 %s13, 2
        // Predicated region
        $region45: #{tpu_custom_call.1} parent=43 // pred_check
          %p468 = pneg %p160
        $region46: #{tpu_custom_call.1} parent=43 // pred_check_branch
          %470 = sbr.rel (%p468) target = $region48
        $region47: #{tpu_custom_call.1} parent=43 // pred_region
          %s471 = sand.u32 %s145, 1
          %s472 = scalar_lea.sflag [#allocation3], %s471
          %s473 = sand.u32 %s145, 1
          %s474 = smul.addr %s473, 8
          %s475 = scalar_lea.vmem [#allocation2], %s474
          %476 = dma.done %s472, 128
        $region48: #{tpu_custom_call.1} parent=43 // pred_fallthru
          _
      $region44: #{tpu_custom_call.1} parent=5 // pred_fallthru
        _
    $region6: #{tpu_custom_call.1} parent=1 // loop_footer
      %s17 = sadd.s32 1, %s13
    $region7: #{tpu_custom_call.1} parent=1 // loop_footer_branch
      %12 = sbr.rel target = $region3
    $region8: #{tpu_custom_call.1} parent=1 // loop_exit
      _
    %477 = vsyncpa [#allocation3], 1
    %s478 = scalar_lea.sflag [#allocation3], 1
    %479 = vsyncpa %s478, 1

</llo_original>
